<compile_context>
chip_gen: v7x
topology: tpu7x:2x2x1
jax: 0.10.0
libtpu: 0.0.40
codegen_flags: <defaults>
</compile_context>

<pallas_src>
import functools

import jax
import jax.numpy as jnp
from jax import lax
from jax.experimental import pallas as pl
from jax.experimental.pallas import tpu as pltpu

LANE = 128
SUB = 8
TM = 8192          # rows per block -> (8192, 128) f32 = 4 MiB


def _default_ncores() -> int:
    # Split the leading ("parallel") grid axis across TensorCores only on chips
    # where one JAX device owns 2 TCs (v4 megacore, v7x). On 1-TC devices
    # (v5e / v6e) a 2-way split is just a sequential loop with an extra slab
    # flush, so keep it at 1 there.
    try:
        kind = jax.devices()[0].device_kind.lower()
    except Exception:
        return 1
    if "v4" in kind or "7" in kind:
        return 2
    return 1


def _power_loss_kernel(x_ref, t_ref, sum_ref, cnt_ref, *,
                       power, n_valid, tm, nb, nbc, need_tail, has_dup):
    c = pl.program_id(0)           # core slab
    i = pl.program_id(1)           # row-block within this core's range
    bid = c * nbc + i              # logical (unclamped) block id

    @pl.when(i == 0)
    def _():
        sum_ref[...] = jnp.zeros_like(sum_ref)
        cnt_ref[...] = jnp.zeros_like(cnt_ref)

    def accumulate(extra_mask):
        x = x_ref[...].astype(jnp.float32)
        t = t_ref[...].astype(jnp.float32)
        valid = jnp.logical_not(jnp.isnan(t))
        if extra_mask is not None:
            valid = jnp.logical_and(valid, extra_mask)
        d = x - t
        if power == 1:
            val = jnp.abs(d)
        elif power == 2:
            val = d * d
        elif power == 3:
            val = jnp.abs(d) * (d * d)        # 3 VPU ops, no pow
        else:
            val = jnp.abs(d) ** power         # static int -> multiply chain
        # Select-based masking: garbage / NaN never propagates into the sum.
        val = jnp.where(valid, val, 0.0)
        cnt = valid.astype(jnp.float32)
        # (tm,128) -> (tm//8, 8, 128) is a pure vreg regrouping; sum(axis=0)
        # is elementwise VPU adds into the resident (8,128) accumulators.
        sum_ref[...] += val.reshape(tm // SUB, SUB, LANE).sum(axis=0)
        cnt_ref[...] += cnt.reshape(tm // SUB, SUB, LANE).sum(axis=0)

    if need_tail:
        # Only the final logical block can contain elements past `n_valid`
        # (host pad and/or partial boundary block). Interior blocks pay no
        # mask cost; duplicate blocks (bid >= nb) fall through both branches.
        @pl.when(bid < nb - 1)
        def _():
            accumulate(None)

        @pl.when(bid == nb - 1)
        def _():
            row = bid * tm + lax.broadcasted_iota(jnp.int32, (tm, LANE), 0)
            full_rows = n_valid // LANE       # static
            rem = n_valid % LANE              # static
            ok = row < full_rows
            if rem:
                lane = lax.broadcasted_iota(jnp.int32, (tm, LANE), 1)
                ok = jnp.logical_or(
                    ok, jnp.logical_and(row == full_rows, lane < rem))
            accumulate(ok)
    else:
        if has_dup:
            @pl.when(bid < nb)
            def _():
                accumulate(None)
        else:
            accumulate(None)


def power_loss(logits: jax.Array, target: jax.Array, power: int = 3) -> jax.Array:
    """Equivalent of PowerLoss(power).forward(logits, target)."""
    assert logits.shape == target.shape
    assert isinstance(power, int) and power >= 1, "power must be a static int"

    x = logits.reshape(-1)
    t = target.reshape(-1)
    # Stream the narrowest faithful float dtype (bf16 halves HBM traffic);
    # non-float inputs are cast once (they cannot contain NaN anyway).
    if not jnp.issubdtype(x.dtype, jnp.floating):
        x = x.astype(jnp.float32)
    if not jnp.issubdtype(t.dtype, jnp.floating):
        t = t.astype(jnp.float32)

    n = x.shape[0]
    if n == 0:
        return jnp.array(jnp.nan, dtype=jnp.float32)   # torch.mean(empty) -> NaN

    rows_needed = -(-n // LANE)
    if rows_needed >= TM:
        rows_pad = rows_needed                      # tm = TM (multiple of 8)
    else:
        rows_pad = -(-rows_needed // SUB) * SUB     # small input: tm multiple of 8
    n_pad = rows_pad * LANE
    if n_pad != n:
        # Only when n % 128 != 0 (2-D reshape requires it) or for tiny inputs.
        # Pad values are irrelevant: the in-kernel element-index mask excludes
        # everything at index >= n.
        pad = n_pad - n
        x = jnp.concatenate([x, jnp.zeros((pad,), x.dtype)])
        t = jnp.concatenate([t, jnp.zeros((pad,), t.dtype)])

    x2 = x.reshape(rows_pad, LANE)
    t2 = t.reshape(rows_pad, LANE)

    tm = min(TM, rows_pad)
    nb = -(-rows_pad // tm)                         # total row-blocks
    ncores = _default_ncores() if nb >= 2 else 1
    nbc = -(-nb // ncores)                          # row-blocks per core
    has_dup = (ncores * nbc != nb)
    need_tail = (nb * tm * LANE != n)

    def in_map(c, i):
        # Clamp so the DMA never indexes past the array; clamped duplicate
        # blocks are skipped entirely in-kernel.
        return (jnp.minimum(c * nbc + i, nb - 1), 0)

    kernel = functools.partial(
        _power_loss_kernel, power=power, n_valid=n, tm=tm, nb=nb, nbc=nbc,
        need_tail=need_tail, has_dup=has_dup)

    sums, cnts = pl.pallas_call(
        kernel,
        out_shape=(
            jax.ShapeDtypeStruct((ncores, SUB, LANE), jnp.float32),
            jax.ShapeDtypeStruct((ncores, SUB, LANE), jnp.float32),
        ),
        grid_spec=pltpu.PrefetchScalarGridSpec(
            num_scalar_prefetch=0,
            grid=(ncores, nbc),
            in_specs=[
                pl.BlockSpec((tm, LANE), in_map),
                pl.BlockSpec((tm, LANE), in_map),
            ],
            out_specs=[
                pl.BlockSpec((None, SUB, LANE), lambda c, i: (c, 0, 0)),
                pl.BlockSpec((None, SUB, LANE), lambda c, i: (c, 0, 0)),
            ],
        ),
        compiler_params=pltpu.CompilerParams(
            dimension_semantics=("parallel", "arbitrary"),
            vmem_limit_bytes=32 * 1024 * 1024),
    )(x2, t2)

    total = jnp.sum(sums, dtype=jnp.float32)
    count = jnp.sum(cnts, dtype=jnp.float32)
    # Mean over valid elements (0/0 -> NaN matches torch.mean of empty tensor).
    return total / count


def power_loss_ref(logits, target, power=3):
    mask = jnp.logical_not(jnp.isnan(target))
    diff = jnp.abs(jnp.where(mask, logits - target, 0.0)) ** power
    return jnp.sum(jnp.where(mask, diff, 0.0)) / jnp.sum(mask.astype(jnp.float32))


if __name__ == "__main__":
    key = jax.random.PRNGKey(0)
    k1, k2, k3 = jax.random.split(key, 3)

    B, C, H, W = 2, 4, 16, 16
    logits = jax.random.normal(k1, (B, C, H, W), dtype=jnp.float32)
    target = jax.random.normal(k2, (B, C, H, W), dtype=jnp.float32)
    # Poke ~10% NaNs into the target.
    nan_mask = jax.random.uniform(k3, (B, C, H, W)) < 0.1
    target = jnp.where(nan_mask, jnp.nan, target)

    out = jax.block_until_ready(power_loss(logits, target, power=3))
    ref = power_loss_ref(logits, target, power=3)
    assert jnp.allclose(out, ref, rtol=1e-5, atol=1e-6), (out, ref)

    # Ragged size (n % 128 != 0) exercises the in-kernel tail-mask path.
    k4, k5 = jax.random.split(k3)
    xr = jax.random.normal(k4, (3, 5, 7), dtype=jnp.float32)
    tr = jax.random.normal(k5, (3, 5, 7), dtype=jnp.float32)
    tr = tr.at[0, 0, 0].set(jnp.nan)
    out_r = jax.block_until_ready(power_loss(xr, tr, power=3))
    ref_r = power_loss_ref(xr, tr, power=3)
    assert jnp.allclose(out_r, ref_r, rtol=1e-5, atol=1e-6), (out_r, ref_r)

    print("KERNEL_OK")
</pallas_src>

<mosaic_0001>
module attributes {stable_mosaic.version = 11 : i64} {
  func.func @_power_loss_kernel(%arg0: i32, %arg1: i32, %arg2: memref<16x128xf32, #tpu.memory_space<vmem>>, %arg3: memref<16x128xf32, #tpu.memory_space<vmem>>, %arg4: memref<1x8x128xf32, #tpu.memory_space<vmem>>, %arg5: memref<1x8x128xf32, #tpu.memory_space<vmem>>) attributes {dimension_semantics = [#tpu.dimension_semantics<parallel>, #tpu.dimension_semantics<arbitrary>], iteration_bounds = array<i64: 1, 1>, scalar_prefetch = 0 : i64, scratch_operands = 0 : i64, tpu.core_type = #tpu.core_type<tc>, window_params = [{transform_indices = @transform_0, window_bounds = array<i64: 16, 128>}, {transform_indices = @transform_1, window_bounds = array<i64: 16, 128>}, {transform_indices = @transform_2, window_bounds = array<i64: 1, 8, 128>}, {transform_indices = @transform_3, window_bounds = array<i64: 1, 8, 128>}]} {
    %c0_i32 = arith.constant 0 : i32
    %0 = arith.cmpi eq, %arg1, %c0_i32 : i32
    %1 = arith.extui %0 : i1 to i32
    %c0_i32_0 = arith.constant 0 : i32
    %2 = arith.cmpi ne, %1, %c0_i32_0 : i32
    scf.if %2 {
      %cst_19 = arith.constant 0.000000e+00 : f32
      %31 = vector.broadcast %cst_19 : f32 to vector<8x128xf32>
      %c0_20 = arith.constant 0 : index
      %c0_21 = arith.constant 0 : index
      %c0_22 = arith.constant 0 : index
      %32 = vector.load %arg4[%c0_20, %c0_21, %c0_22] : memref<1x8x128xf32, #tpu.memory_space<vmem>>, vector<1x8x128xf32>
      %33 = vector.shape_cast %32 : vector<1x8x128xf32> to vector<8x128xf32>
      %34 = vector.shape_cast %31 : vector<8x128xf32> to vector<1x8x128xf32>
      tpu.vector_store %arg4[%c0_20, %c0_21, %c0_22], %34 {strides = array<i32>} : memref<1x8x128xf32, #tpu.memory_space<vmem>>, vector<1x8x128xf32>,
      %cst_23 = arith.constant 0.000000e+00 : f32
      %35 = vector.broadcast %cst_23 : f32 to vector<8x128xf32>
      %c0_24 = arith.constant 0 : index
      %c0_25 = arith.constant 0 : index
      %c0_26 = arith.constant 0 : index
      %36 = vector.load %arg5[%c0_24, %c0_25, %c0_26] : memref<1x8x128xf32, #tpu.memory_space<vmem>>, vector<1x8x128xf32>
      %37 = vector.shape_cast %36 : vector<1x8x128xf32> to vector<8x128xf32>
      %38 = vector.shape_cast %35 : vector<8x128xf32> to vector<1x8x128xf32>
      tpu.vector_store %arg5[%c0_24, %c0_25, %c0_26], %38 {strides = array<i32>} : memref<1x8x128xf32, #tpu.memory_space<vmem>>, vector<1x8x128xf32>,
    } else {
    }
    %c0 = arith.constant 0 : index
    %c0_1 = arith.constant 0 : index
    %3 = vector.load %arg2[%c0, %c0_1] : memref<16x128xf32, #tpu.memory_space<vmem>>, vector<16x128xf32>
    %c0_2 = arith.constant 0 : index
    %c0_3 = arith.constant 0 : index
    %4 = vector.load %arg3[%c0_2, %c0_3] : memref<16x128xf32, #tpu.memory_space<vmem>>, vector<16x128xf32>
    %5 = arith.cmpf one, %4, %4 : vector<16x128xf32>
    %cst = arith.constant dense<true> : vector<16x128xi1>
    %6 = arith.xori %5, %cst : vector<16x128xi1>
    %7 = arith.subf %3, %4 : vector<16x128xf32>
    %8 = math.absf %7 : vector<16x128xf32>
    %9 = arith.mulf %7, %7 : vector<16x128xf32>
    %10 = arith.mulf %8, %9 : vector<16x128xf32>
    %cst_4 = arith.constant 0.000000e+00 : f32
    %11 = vector.broadcast %cst_4 : f32 to vector<16x128xf32>
    %12 = arith.select %6, %10, %11 : vector<16x128xi1>, vector<16x128xf32>
    %13 = arith.extui %6 : vector<16x128xi1> to vector<16x128xi32>
    %14 = arith.sitofp %13 : vector<16x128xi32> to vector<16x128xf32>
    %c0_5 = arith.constant 0 : index
    %c0_6 = arith.constant 0 : index
    %c0_7 = arith.constant 0 : index
    %15 = vector.load %arg4[%c0_5, %c0_6, %c0_7] : memref<1x8x128xf32, #tpu.memory_space<vmem>>, vector<1x8x128xf32>
    %16 = vector.shape_cast %15 : vector<1x8x128xf32> to vector<8x128xf32>
    %17 = vector.shape_cast %12 : vector<16x128xf32> to vector<2x8x128xf32>
    %cst_8 = arith.constant dense<0.000000e+00> : vector<8x128xf32>
    %18 = vector.multi_reduction <add>, %17, %cst_8 [0] : vector<2x8x128xf32> to vector<8x128xf32>
    %19 = arith.addf %16, %18 : vector<8x128xf32>
    %c0_9 = arith.constant 0 : index
    %c0_10 = arith.constant 0 : index
    %c0_11 = arith.constant 0 : index
    %20 = vector.load %arg4[%c0_9, %c0_10, %c0_11] : memref<1x8x128xf32, #tpu.memory_space<vmem>>, vector<1x8x128xf32>
    %21 = vector.shape_cast %20 : vector<1x8x128xf32> to vector<8x128xf32>
    %22 = vector.shape_cast %19 : vector<8x128xf32> to vector<1x8x128xf32>
    tpu.vector_store %arg4[%c0_9, %c0_10, %c0_11], %22 {strides = array<i32>} : memref<1x8x128xf32, #tpu.memory_space<vmem>>, vector<1x8x128xf32>,
    %c0_12 = arith.constant 0 : index
    %c0_13 = arith.constant 0 : index
    %c0_14 = arith.constant 0 : index
    %23 = vector.load %arg5[%c0_12, %c0_13, %c0_14] : memref<1x8x128xf32, #tpu.memory_space<vmem>>, vector<1x8x128xf32>
    %24 = vector.shape_cast %23 : vector<1x8x128xf32> to vector<8x128xf32>
    %25 = vector.shape_cast %14 : vector<16x128xf32> to vector<2x8x128xf32>
    %cst_15 = arith.constant dense<0.000000e+00> : vector<8x128xf32>
    %26 = vector.multi_reduction <add>, %25, %cst_15 [0] : vector<2x8x128xf32> to vector<8x128xf32>
    %27 = arith.addf %24, %26 : vector<8x128xf32>
    %c0_16 = arith.constant 0 : index
    %c0_17 = arith.constant 0 : index
    %c0_18 = arith.constant 0 : index
    %28 = vector.load %arg5[%c0_16, %c0_17, %c0_18] : memref<1x8x128xf32, #tpu.memory_space<vmem>>, vector<1x8x128xf32>
    %29 = vector.shape_cast %28 : vector<1x8x128xf32> to vector<8x128xf32>
    %30 = vector.shape_cast %27 : vector<8x128xf32> to vector<1x8x128xf32>
    tpu.vector_store %arg5[%c0_16, %c0_17, %c0_18], %30 {strides = array<i32>} : memref<1x8x128xf32, #tpu.memory_space<vmem>>, vector<1x8x128xf32>,
    return
  }
  func.func @transform_0(%arg0: i32, %arg1: i32) -> (i32, i32) {
    %c1_i32 = arith.constant 1 : i32
    %0 = arith.muli %arg0, %c1_i32 : i32
    %1 = arith.addi %0, %arg1 : i32
    %c0_i32 = arith.constant 0 : i32
    %2 = arith.minsi %1, %c0_i32 : i32
    %c0_i32_0 = arith.constant 0 : i32
    %c0_i32_1 = arith.constant 0 : i32
    return %2, %c0_i32_0 : i32, i32
  }
  func.func @transform_1(%arg0: i32, %arg1: i32) -> (i32, i32) {
    %c1_i32 = arith.constant 1 : i32
    %0 = arith.muli %arg0, %c1_i32 : i32
    %1 = arith.addi %0, %arg1 : i32
    %c0_i32 = arith.constant 0 : i32
    %2 = arith.minsi %1, %c0_i32 : i32
    %c0_i32_0 = arith.constant 0 : i32
    %c0_i32_1 = arith.constant 0 : i32
    return %2, %c0_i32_0 : i32, i32
  }
  func.func @transform_2(%arg0: i32, %arg1: i32) -> (i32, i32, i32) {
    %c0_i32 = arith.constant 0 : i32
    %c0_i32_0 = arith.constant 0 : i32
    %c0_i32_1 = arith.constant 0 : i32
    return %arg0, %c0_i32, %c0_i32_0 : i32, i32, i32
  }
  func.func @transform_3(%arg0: i32, %arg1: i32) -> (i32, i32, i32) {
    %c0_i32 = arith.constant 0 : i32
    %c0_i32_0 = arith.constant 0 : i32
    %c0_i32_1 = arith.constant 0 : i32
    return %arg0, %c0_i32, %c0_i32_0 : i32, i32, i32
  }
}

</mosaic_0001>

<llo_original>
// kernel: tpu_custom_call.1
$region0: #{tpu_custom_call.1}
  #allocation0 [shape = 'u32[]', space=smem, size = 0x4, offset = 0x4, fixed_abs, tag = 'smem constant byte address 0x4 - core index']
  #allocation1 [shape = 'u32[144,128]{1,0:T(1,128)}', space=vmem, size = 0x12000, scoped, tag = 'internal scratch']
  %s0 = inlined_call_operand.hbm [shape: f32[16,128], index: 0, kind: input, shape index: {}]
  %s1 = inlined_call_operand.hbm [shape: f32[16,128], index: 1, kind: input, shape index: {}]
  %s2 = inlined_call_operand.hbm [shape: f32[1,8,128], index: 2, kind: output, shape index: {0}]
  %s3 = inlined_call_operand.hbm [shape: f32[1,8,128], index: 3, kind: output, shape index: {1}]
  %4 = xla_tuple %s2, %s3
  %s5 = sld [smem:[#allocation0]]
  $region38: #{tpu_custom_call.1} parent=0
    _
  %s7 = ssub.s32 1, %s5
  %s8 = scalar_select 0, %s7, %s5
  $region1: #{tpu_custom_call.1} parent=0
    #allocation2 [shape = 'u8[8192]{0}', space=vmem, size = 0x2000, scoped, tag = 'input window, operand 0, single buffered']
    #allocation3 [shape = 's32[1]{0}', space=sflag, size = 0x4, scoped, tag = 'scoped memory for tpu_custom_call.1']
    #allocation4 [shape = 's32[1]{0}', space=sflag, size = 0x4, scoped, tag = 'scoped memory for tpu_custom_call.1']
    #allocation5 [shape = 'u8[8192]{0}', space=vmem, size = 0x2000, scoped, tag = 'input window, operand 1, single buffered']
    #allocation6 [shape = 's32[1]{0}', space=sflag, size = 0x4, scoped, tag = 'scoped memory for tpu_custom_call.1']
    #allocation7 [shape = 'u8[4096]{0}', space=vmem, size = 0x1000, scoped, tag = 'output window, operand 0, single buffered']
    #allocation8 [shape = 'u8[4096]{0}', space=vmem, size = 0x1000, scoped, tag = 'output window, operand 1, single buffered']
    #allocation9 [shape = 's32[1]{0}', space=sflag, size = 0x4, scoped, tag = 'scoped memory for tpu_custom_call.1']
    %9 = vsyncpa [#allocation3], 0
    %10 = vsyncpa [#allocation6], 0
    %11 = vsyncpa [#allocation4], 0
    %12 = vsyncpa [#allocation9], 0
    // Predicated region
    $region2: #{tpu_custom_call.1} parent=1 // pred_check
      _
    $region3: #{tpu_custom_call.1} parent=1 // pred_check_branch
      %14 = sbr.rel (0) target = $region5
    $region4: #{tpu_custom_call.1} parent=1 // pred_region
      %s15 = sadd.s32 0, 0
      %p16 = scmp.lt.s32.totalorder %s15, 0
      %s17 = scalar_select %p16, %s15, 0
      %s18 = smul.u32 2, %s17
      %s20 = ssub.s32 256, 256
      %21 = vsyncadd [#allocation3], %s20
      %s22 = smul.addr %s18, 128
      %s23 = scalar_lea.hbm %s0, %s22
      %s24 = sshll.u32 [#allocation2], 4
      %s25 = int_to_ptr.vmem [resolvable:$true] %s24
      %30 = dma.hbm_to_vmem [thread:$0]  %s23, 256, %s25, [#allocation3], 128, 128, 8
    $region5: #{tpu_custom_call.1} parent=1 // pred_fallthru
      _
    // Predicated region
    $region6: #{tpu_custom_call.1} parent=1 // pred_check
      _
    $region7: #{tpu_custom_call.1} parent=1 // pred_check_branch
      %32 = sbr.rel (0) target = $region9
    $region8: #{tpu_custom_call.1} parent=1 // pred_region
      %s33 = sadd.s32 0, 0
      %p34 = scmp.lt.s32.totalorder %s33, 0
      %s35 = scalar_select %p34, %s33, 0
      %s36 = smul.u32 2, %s35
      %s38 = ssub.s32 256, 256
      %39 = vsyncadd [#allocation6], %s38
      %s40 = smul.addr %s36, 128
      %s41 = scalar_lea.hbm %s1, %s40
      %s42 = sshll.u32 [#allocation5], 4
      %s43 = int_to_ptr.vmem [resolvable:$true] %s42
      %48 = dma.hbm_to_vmem [thread:$0]  %s41, 256, %s43, [#allocation6], 128, 128, 8
    $region9: #{tpu_custom_call.1} parent=1 // pred_fallthru
      _
    // Predicated region
    $region10: #{tpu_custom_call.1} parent=1 // pred_check
      _
    $region11: #{tpu_custom_call.1} parent=1 // pred_check_branch
      %50 = sbr.rel (0) target = $region13
    $region12: #{tpu_custom_call.1} parent=1 // pred_region
      %51 = dma.done [#allocation3], 256
    $region13: #{tpu_custom_call.1} parent=1 // pred_fallthru
      _
    // Predicated region
    $region14: #{tpu_custom_call.1} parent=1 // pred_check
      _
    $region15: #{tpu_custom_call.1} parent=1 // pred_check_branch
      %53 = sbr.rel (0) target = $region17
    $region16: #{tpu_custom_call.1} parent=1 // pred_region
      %54 = dma.done [#allocation6], 256
    $region17: #{tpu_custom_call.1} parent=1 // pred_fallthru
      _
    %s55 = sadd.s32 0, 0
    %p56 = scmp.lt.s32.totalorder %s55, 0
    %s57 = scalar_select %p56, %s55, 0
    %s58 = smul.u32 2, %s57
    %s59 = sadd.s32 0, 0
    %p60 = scmp.lt.s32.totalorder %s59, 0
    %s61 = scalar_select %p60, %s59, 0
    %s62 = smul.u32 2, %s61
    %p63 = scmp.eq.s32.totalorder 0, 0
    // Predicated region
    $region18: #{tpu_custom_call.1} parent=1 // pred_check
      %p64 = pneg %p63
    $region19: #{tpu_custom_call.1} parent=1 // pred_check_branch
      %66 = sbr.rel (%p64) target = $region21
    $region20: #{tpu_custom_call.1} parent=1 // pred_region
      %67 = vst [vmem:[#allocation7] sm:$0xff] 0.0
      %68 = vst [vmem:[#allocation8] sm:$0xff] 0.0
    $region21: #{tpu_custom_call.1} parent=1 // pred_fallthru
      _
    %v69 = vld [vmem:[#allocation2] sm:$0xff]
    %v70 = vld [vmem:[#allocation2 + $0x8] sm:$0xff]
    %v71 = vld [vmem:[#allocation5] sm:$0xff]
    %v72 = vld [vmem:[#allocation5 + $0x8] sm:$0xff]
    %vm73 = vcmp.ne.f32.partialorder %v71, %v71
    %vm74 = vcmp.ne.f32.partialorder %v72, %v72
    %vm75 = vmxor %vm73, 1
    %vm76 = vmxor %vm74, 1
    %v77 = vsub.f32 %v69, %v71
    %v78 = vsub.f32 %v70, %v72
    %v79 = vand.u32 2147483647, %v77
    %v80 = vand.u32 2147483647, %v78
    %v81 = vmul.f32 %v77, %v77
    %v82 = vmul.f32 %v78, %v78
    %v83 = vmul.f32 %v79, %v81
    %v84 = vmul.f32 %v80, %v82
    %v85 = vsel %vm75, %v83, 0.0
    %v86 = vsel %vm76, %v84, 0.0
    %v87 = vsel %vm75, 1, 0
    %v88 = vsel %vm76, 1, 0
    %v89 = vcvt.s32.f32 %v87
    %v90 = vcvt.s32.f32 %v88
    %v91 = vld [vmem:[#allocation7] sm:$0xff]
    %v92 = vadd.f32 %v85, %v86
    %v93 = vadd.f32 %v91, %v92
    %94 = vst [vmem:[#allocation7] sm:$0xff] %v93
    %v95 = vld [vmem:[#allocation8] sm:$0xff]
    %v96 = vadd.f32 %v89, %v90
    %v97 = vadd.f32 %v95, %v96
    %98 = vst [vmem:[#allocation8] sm:$0xff] %v97
    // Predicated region
    $region22: #{tpu_custom_call.1} parent=1 // pred_check
      _
    $region23: #{tpu_custom_call.1} parent=1 // pred_check_branch
      %100 = sbr.rel (0) target = $region25
    $region24: #{tpu_custom_call.1} parent=1 // pred_region
      %s102 = ssub.s32 128, 128
      %103 = vsyncadd [#allocation4], %s102
      %s105 = sshll.u32 [#allocation7], 4
      %s106 = int_to_ptr.vmem [resolvable:$true] %s105
      %108 = dma.vmem_to_hbm [thread:$0]  %s106, 128, %s2, [#allocation4]
    $region25: #{tpu_custom_call.1} parent=1 // pred_fallthru
      _
    // Predicated region
    $region26: #{tpu_custom_call.1} parent=1 // pred_check
      _
    $region27: #{tpu_custom_call.1} parent=1 // pred_check_branch
      %110 = sbr.rel (0) target = $region29
    $region28: #{tpu_custom_call.1} parent=1 // pred_region
      %s112 = ssub.s32 128, 128
      %113 = vsyncadd [#allocation9], %s112
      %s115 = sshll.u32 [#allocation8], 4
      %s116 = int_to_ptr.vmem [resolvable:$true] %s115
      %118 = dma.vmem_to_hbm [thread:$0]  %s116, 128, %s3, [#allocation9]
    $region29: #{tpu_custom_call.1} parent=1 // pred_fallthru
      _
    // Predicated region
    $region30: #{tpu_custom_call.1} parent=1 // pred_check
      _
    $region31: #{tpu_custom_call.1} parent=1 // pred_check_branch
      %120 = sbr.rel (0) target = $region33
    $region32: #{tpu_custom_call.1} parent=1 // pred_region
      %121 = dma.done [#allocation4], 128
    $region33: #{tpu_custom_call.1} parent=1 // pred_fallthru
      _
    // Predicated region
    $region34: #{tpu_custom_call.1} parent=1 // pred_check
      _
    $region35: #{tpu_custom_call.1} parent=1 // pred_check_branch
      %123 = sbr.rel (0) target = $region37
    $region36: #{tpu_custom_call.1} parent=1 // pred_region
      %124 = dma.done [#allocation9], 128
    $region37: #{tpu_custom_call.1} parent=1 // pred_fallthru
      _
    %125 = vsyncpa [#allocation3], 1
    %126 = vsyncpa [#allocation6], 1
    %127 = vsyncpa [#allocation4], 1
    %128 = vsyncpa [#allocation9], 1

</llo_original>
